<compile_context>
chip_gen: v5e
topology: v5e:2x2
jax: 0.10.0
libtpu: 0.0.40
codegen_flags: <defaults>
</compile_context>

<pallas_src>
import functools

import jax
import jax.numpy as jnp
from jax.experimental import pallas as pl
from jax.experimental.pallas import tpu as pltpu


def _round_up(n: int, m: int) -> int:
    return ((n + m - 1) // m) * m


# ---------------------------------------------------------------------------
# Fused kernel: the ResSequential layer loop unrolls inside the kernel body.
# ---------------------------------------------------------------------------
def _fused_res_sequential_kernel(*refs, layer_kinds, has_time):
    """refs = (x_ref, [t_ref,] *param_refs, o_ref); layer_kinds is static."""
    if has_time:
        x_ref, t_ref = refs[0], refs[1]
        param_refs = refs[2:-1]
    else:
        x_ref, t_ref = refs[0], None
        param_refs = refs[1:-1]
    o_ref = refs[-1]

    # Carry the activation in f32; feed the MXU bf16 operands.
    x = x_ref[...].astype(jnp.float32)

    p = 0
    for kind in layer_kinds:
        if kind[0] == "linear":                       # plain layer branch: layer(x)
            w_ref, b_ref = param_refs[p], param_refs[p + 1]
            p += 2
            x = jnp.dot(x.astype(jnp.bfloat16), w_ref[...],
                        preferred_element_type=jnp.float32) + b_ref[...]
            if kind[1]:                               # fused ReLU
                x = jnp.maximum(x, 0.0)
        elif kind[0] == "res_mlp":                    # isinstance(layer, ResMLP): layer(x, t)
            w1_ref, b1_ref, w2_ref, b2_ref = param_refs[p:p + 4]
            p += 4
            # Load t at first use so its live range starts inside this branch.
            h = (x + t_ref[...]).astype(jnp.bfloat16)
            h = jnp.dot(h, w1_ref[...], preferred_element_type=jnp.float32) + b1_ref[...]
            h = jnp.maximum(h, 0.0).astype(jnp.bfloat16)
            # Fold the residual immediately (no separate y) to keep live set small.
            x = x + (jnp.dot(h, w2_ref[...], preferred_element_type=jnp.float32)
                     + b2_ref[...])
        else:
            raise ValueError(f"unknown layer kind {kind!r}")

    o_ref[...] = x.astype(o_ref.dtype)


# ---------------------------------------------------------------------------
# Wrapper: builds grid/BlockSpecs and issues a single pallas_call.
# ---------------------------------------------------------------------------
def _fused_forward(layers, x, t):
    B, H = x.shape

    # Flatten params (static order), static per-layer kinds, per-layer widths.
    params, layer_kinds = [], []
    has_time = False
    d = H
    for layer in layers:
        if layer[0] == "res_mlp":
            _, (w1, b1, w2, b2) = layer
            assert w1.shape[0] == d and w2.shape[1] == d, \
                "res_mlp must preserve the running width"
            assert t is not None and t.shape == (B, d), \
                "t must match x's width wherever a ResMLP layer consumes it"
            params += [w1, b1, w2, b2]
            layer_kinds.append(("res_mlp",))
            has_time = True
        else:
            _, (w, b), relu = layer
            assert w.shape[0] == d, "linear layer fan_in mismatch"
            params += [w, b]
            layer_kinds.append(("linear", bool(relu)))
            d = w.shape[1]
    d_out = d
    max_w = max(H, d_out)

    # ---- generation-aware VMEM budget -------------------------------------
    try:
        vmem_cap = int(pltpu.get_tpu_info().vmem_capacity_bytes)
    except Exception:
        vmem_cap = 64 * 1024 * 1024            # conservative (v7x per-TC)
    budget = int(0.85 * vmem_cap)              # ~15% headroom for Mosaic scratch

    params_bytes = sum(int(p.size) * p.dtype.itemsize for p in params)

    # Grid-invariant weights are double-buffered by default; single-buffer them
    # only when that doubling would eat a large fraction of the budget (keeps
    # the small-model path on the vanilla BlockSpec configuration).
    single_buffer_params = (2 * params_bytes > budget // 2)
    param_bufs = 1 if single_buffer_params else 2

    def vmem_estimate(tm):
        act_in = 2 * tm * H * x.dtype.itemsize * (2 if has_time else 1)   # 2x buffered
        act_out = 2 * tm * d_out * x.dtype.itemsize
        live = 8 * tm * max_w * 4              # f32/bf16 intermediates in the body
        return params_bytes * param_bufs + act_in + act_out + live + (2 << 20)

    # ---- batch tiling -------------------------------------------------------
    if B < 8:
        TM = B                                  # full-extent block (< sublane tile)
    else:
        TM = 8
        for cand in (512, 384, 256, 128, 64, 32, 16, 8):
            if cand <= _round_up(B, 8) and vmem_estimate(cand) <= budget:
                TM = cand
                break
        # Keep both v7x TensorCores busy when the batch allows >= 2 grid steps.
        if pl.cdiv(B, TM) < 2 and B >= 16:
            TM = max(8, _round_up(pl.cdiv(B, 2), 8))
    grid = (pl.cdiv(B, TM),)                    # ragged last block handled by Pallas

    if vmem_estimate(TM) > budget:
        # TODO(synk): stream weight tiles from HBM (pl.ANY + emit_pipeline) here.
        pass

    # ---- specs --------------------------------------------------------------
    x_spec = pl.BlockSpec((TM, H), lambda i: (i, 0))
    out_spec = pl.BlockSpec((TM, d_out), lambda i: (i, 0))
    in_specs = [x_spec]
    inputs = [x]
    if has_time:
        in_specs.append(pl.BlockSpec((TM, H), lambda i: (i, 0)))
        inputs.append(t)
    for p in params:
        if single_buffer_params:
            spec = pl.BlockSpec(p.shape, lambda i: (0, 0),
                                pipeline_mode=pl.Buffered(1))
        else:
            spec = pl.BlockSpec(p.shape, lambda i: (0, 0))
        in_specs.append(spec)
        inputs.append(p)

    # ---- cost estimate (advisory) ------------------------------------------
    rows = grid[0] * TM
    flops = 0
    for layer in layers:
        if layer[0] == "res_mlp":
            _, (w1, _, w2, _) = layer
            flops += 2 * rows * (w1.shape[0] * w1.shape[1] + w2.shape[0] * w2.shape[1])
        else:
            _, (w, _), _ = layer
            flops += 2 * rows * w.shape[0] * w.shape[1]
    bytes_accessed = (x.size * x.dtype.itemsize
                      + (t.size * t.dtype.itemsize if has_time else 0)
                      + B * d_out * x.dtype.itemsize
                      + params_bytes)
    cost = pl.CostEstimate(flops=int(flops), transcendentals=0,
                           bytes_accessed=int(bytes_accessed))

    vmem_limit = int(min(budget, max(vmem_estimate(TM), 16 * 1024 * 1024)))

    kernel = functools.partial(_fused_res_sequential_kernel,
                               layer_kinds=tuple(layer_kinds),
                               has_time=has_time)

    return pl.pallas_call(
        kernel,
        out_shape=jax.ShapeDtypeStruct((B, d_out), x.dtype),
        grid=grid,
        in_specs=in_specs,
        out_specs=out_spec,
        compiler_params=pltpu.CompilerParams(
            dimension_semantics=("parallel",),
            vmem_limit_bytes=vmem_limit),
        cost_estimate=cost,
    )(*inputs)


# ---------------------------------------------------------------------------
# ResSequential container (same semantics as the PyTorch forward loop, but the
# whole stack executes as one fused, jitted Pallas kernel).
# ---------------------------------------------------------------------------
class ResSequential:
    """layers: ('linear', (w, b), relu_flag) or ('res_mlp', (w1, b1, w2, b2)).

    ResMLP-style layers receive (x, t); everything else receives (x,).
    Weights are stored bf16 (MXU-native); biases stay f32.
    """

    def __init__(self, *layers):
        proc = []
        for layer in layers:
            if layer[0] == "res_mlp":
                _, (w1, b1, w2, b2) = layer
                proc.append(("res_mlp",
                             (jnp.asarray(w1).astype(jnp.bfloat16),
                              jnp.asarray(b1, jnp.float32).reshape(1, -1),
                              jnp.asarray(w2).astype(jnp.bfloat16),
                              jnp.asarray(b2, jnp.float32).reshape(1, -1))))
            else:
                _, (w, b), relu = layer
                proc.append(("linear",
                             (jnp.asarray(w).astype(jnp.bfloat16),
                              jnp.asarray(b, jnp.float32).reshape(1, -1)),
                             bool(relu)))
        self.layers = proc
        self._fwd = jax.jit(lambda x, t: _fused_forward(self.layers, x, t))

    def __call__(self, x, t):
        return self._fwd(x, t)


# Pure-JAX reference (same bf16-operand / f32-accumulate math) ---------------
def reference_forward(layers, x, t):
    x = x.astype(jnp.float32)
    for layer in layers:
        if layer[0] == "res_mlp":
            _, (w1, b1, w2, b2) = layer
            h = jnp.maximum(
                jnp.dot((x + t).astype(jnp.bfloat16), w1,
                        preferred_element_type=jnp.float32) + b1, 0.0)
            x = x + (jnp.dot(h.astype(jnp.bfloat16), w2,
                             preferred_element_type=jnp.float32) + b2)
        else:
            _, (w, b), relu = layer
            x = jnp.dot(x.astype(jnp.bfloat16), w,
                        preferred_element_type=jnp.float32) + b
            if relu:
                x = jnp.maximum(x, 0.0)
    return x


# ---------------------------------------------------------------------------
if __name__ == "__main__":
    B, H = 8, 128  # small, (8,128)-aligned

    key = jax.random.PRNGKey(0)
    ks = jax.random.split(key, 8)

    def init_w(k, fan_in, fan_out):
        return (jax.random.normal(k, (fan_in, fan_out), jnp.float32)
                / jnp.sqrt(fan_in)).astype(jnp.float32)

    w0 = init_w(ks[0], H, H); b0 = jnp.zeros((1, H), jnp.float32)
    w1 = init_w(ks[1], H, H); b1 = 0.01 * jnp.ones((1, H), jnp.float32)
    w2 = init_w(ks[2], H, H); b2 = jnp.zeros((1, H), jnp.float32)
    w3 = init_w(ks[3], H, H); b3 = 0.02 * jnp.ones((1, H), jnp.float32)

    model = ResSequential(
        ("linear", (w0, b0), True),            # nn.Linear + ReLU   (non-ResMLP)
        ("res_mlp", (w1, b1, w2, b2)),         # ResMLP-style block (takes x, t)
        ("linear", (w3, b3), False),           # nn.Linear          (non-ResMLP)
    )

    x = jax.random.normal(ks[4], (B, H), jnp.float32)
    t = jax.random.normal(ks[5], (B, H), jnp.float32)

    out = jax.block_until_ready(model(x, t))

    ref = reference_forward(model.layers, x, t)
    assert out.shape == (B, H)
    assert jnp.allclose(out, ref, atol=2e-3, rtol=2e-3), "mismatch vs reference"

    print("KERNEL_OK")
</pallas_src>

<mosaic_0001>
module attributes {stable_mosaic.version = 11 : i64} {
  func.func @_fused_res_sequential_kernel(%arg0: i32, %arg1: memref<8x128xf32, #tpu.memory_space<vmem>>, %arg2: memref<8x128xf32, #tpu.memory_space<vmem>>, %arg3: memref<128x128xbf16, #tpu.memory_space<vmem>>, %arg4: memref<1x128xf32, #tpu.memory_space<vmem>>, %arg5: memref<128x128xbf16, #tpu.memory_space<vmem>>, %arg6: memref<1x128xf32, #tpu.memory_space<vmem>>, %arg7: memref<128x128xbf16, #tpu.memory_space<vmem>>, %arg8: memref<1x128xf32, #tpu.memory_space<vmem>>, %arg9: memref<128x128xbf16, #tpu.memory_space<vmem>>, %arg10: memref<1x128xf32, #tpu.memory_space<vmem>>, %arg11: memref<8x128xf32, #tpu.memory_space<vmem>>) attributes {dimension_semantics = [#tpu.dimension_semantics<parallel>], iteration_bounds = array<i64: 1>, scalar_prefetch = 0 : i64, scratch_operands = 0 : i64, tpu.core_type = #tpu.core_type<tc>, window_params = [{transform_indices = @transform_0, window_bounds = array<i64: 8, 128>}, {transform_indices = @transform_1, window_bounds = array<i64: 8, 128>}, {pipeline_mode = #tpu.pipeline_mode<synchronous>, transform_indices = @transform_2, window_bounds = array<i64: 128, 128>}, {pipeline_mode = #tpu.pipeline_mode<synchronous>, transform_indices = @transform_3, window_bounds = array<i64: 1, 128>}, {pipeline_mode = #tpu.pipeline_mode<synchronous>, transform_indices = @transform_4, window_bounds = array<i64: 128, 128>}, {pipeline_mode = #tpu.pipeline_mode<synchronous>, transform_indices = @transform_5, window_bounds = array<i64: 1, 128>}, {pipeline_mode = #tpu.pipeline_mode<synchronous>, transform_indices = @transform_6, window_bounds = array<i64: 128, 128>}, {pipeline_mode = #tpu.pipeline_mode<synchronous>, transform_indices = @transform_7, window_bounds = array<i64: 1, 128>}, {pipeline_mode = #tpu.pipeline_mode<synchronous>, transform_indices = @transform_8, window_bounds = array<i64: 128, 128>}, {pipeline_mode = #tpu.pipeline_mode<synchronous>, transform_indices = @transform_9, window_bounds = array<i64: 1, 128>}, {transform_indices = @transform_10, window_bounds = array<i64: 8, 128>}]} {
    %c0 = arith.constant 0 : index
    %c0_0 = arith.constant 0 : index
    %0 = vector.load %arg1[%c0, %c0_0] : memref<8x128xf32, #tpu.memory_space<vmem>>, vector<8x128xf32>
    %1 = arith.truncf %0 : vector<8x128xf32> to vector<8x128xbf16>
    %c0_1 = arith.constant 0 : index
    %c0_2 = arith.constant 0 : index
    %2 = vector.load %arg3[%c0_1, %c0_2] : memref<128x128xbf16, #tpu.memory_space<vmem>>, vector<128x128xbf16>
    %cst = arith.constant dense<0.000000e+00> : vector<8x128xf32>
    %3 = tpu.matmul %1, %2, %cst {dimension_numbers = #tpu.dot_dimension_numbers<[1], [0], [0], [1], [0, 0, 1, 1], [], []>} : vector<8x128xbf16>, vector<128x128xbf16>, vector<8x128xf32> -> vector<8x128xf32>
    %c0_3 = arith.constant 0 : index
    %c0_4 = arith.constant 0 : index
    %4 = vector.load %arg4[%c0_3, %c0_4] : memref<1x128xf32, #tpu.memory_space<vmem>>, vector<1x128xf32>
    %5 = vector.broadcast %4 : vector<1x128xf32> to vector<8x128xf32>
    %6 = arith.addf %3, %5 : vector<8x128xf32>
    %cst_5 = arith.constant 0.000000e+00 : f32
    %7 = vector.broadcast %cst_5 : f32 to vector<8x128xf32>
    %8 = arith.maximumf %6, %7 : vector<8x128xf32>
    %c0_6 = arith.constant 0 : index
    %c0_7 = arith.constant 0 : index
    %9 = vector.load %arg2[%c0_6, %c0_7] : memref<8x128xf32, #tpu.memory_space<vmem>>, vector<8x128xf32>
    %10 = arith.addf %8, %9 : vector<8x128xf32>
    %11 = arith.truncf %10 : vector<8x128xf32> to vector<8x128xbf16>
    %c0_8 = arith.constant 0 : index
    %c0_9 = arith.constant 0 : index
    %12 = vector.load %arg5[%c0_8, %c0_9] : memref<128x128xbf16, #tpu.memory_space<vmem>>, vector<128x128xbf16>
    %cst_10 = arith.constant dense<0.000000e+00> : vector<8x128xf32>
    %13 = tpu.matmul %11, %12, %cst_10 {dimension_numbers = #tpu.dot_dimension_numbers<[1], [0], [0], [1], [0, 0, 1, 1], [], []>} : vector<8x128xbf16>, vector<128x128xbf16>, vector<8x128xf32> -> vector<8x128xf32>
    %c0_11 = arith.constant 0 : index
    %c0_12 = arith.constant 0 : index
    %14 = vector.load %arg6[%c0_11, %c0_12] : memref<1x128xf32, #tpu.memory_space<vmem>>, vector<1x128xf32>
    %15 = vector.broadcast %14 : vector<1x128xf32> to vector<8x128xf32>
    %16 = arith.addf %13, %15 : vector<8x128xf32>
    %cst_13 = arith.constant 0.000000e+00 : f32
    %17 = vector.broadcast %cst_13 : f32 to vector<8x128xf32>
    %18 = arith.maximumf %16, %17 : vector<8x128xf32>
    %19 = arith.truncf %18 : vector<8x128xf32> to vector<8x128xbf16>
    %c0_14 = arith.constant 0 : index
    %c0_15 = arith.constant 0 : index
    %20 = vector.load %arg7[%c0_14, %c0_15] : memref<128x128xbf16, #tpu.memory_space<vmem>>, vector<128x128xbf16>
    %cst_16 = arith.constant dense<0.000000e+00> : vector<8x128xf32>
    %21 = tpu.matmul %19, %20, %cst_16 {dimension_numbers = #tpu.dot_dimension_numbers<[1], [0], [0], [1], [0, 0, 1, 1], [], []>} : vector<8x128xbf16>, vector<128x128xbf16>, vector<8x128xf32> -> vector<8x128xf32>
    %c0_17 = arith.constant 0 : index
    %c0_18 = arith.constant 0 : index
    %22 = vector.load %arg8[%c0_17, %c0_18] : memref<1x128xf32, #tpu.memory_space<vmem>>, vector<1x128xf32>
    %23 = vector.broadcast %22 : vector<1x128xf32> to vector<8x128xf32>
    %24 = arith.addf %21, %23 : vector<8x128xf32>
    %25 = arith.addf %8, %24 : vector<8x128xf32>
    %26 = arith.truncf %25 : vector<8x128xf32> to vector<8x128xbf16>
    %c0_19 = arith.constant 0 : index
    %c0_20 = arith.constant 0 : index
    %27 = vector.load %arg9[%c0_19, %c0_20] : memref<128x128xbf16, #tpu.memory_space<vmem>>, vector<128x128xbf16>
    %cst_21 = arith.constant dense<0.000000e+00> : vector<8x128xf32>
    %28 = tpu.matmul %26, %27, %cst_21 {dimension_numbers = #tpu.dot_dimension_numbers<[1], [0], [0], [1], [0, 0, 1, 1], [], []>} : vector<8x128xbf16>, vector<128x128xbf16>, vector<8x128xf32> -> vector<8x128xf32>
    %c0_22 = arith.constant 0 : index
    %c0_23 = arith.constant 0 : index
    %29 = vector.load %arg10[%c0_22, %c0_23] : memref<1x128xf32, #tpu.memory_space<vmem>>, vector<1x128xf32>
    %30 = vector.broadcast %29 : vector<1x128xf32> to vector<8x128xf32>
    %31 = arith.addf %28, %30 : vector<8x128xf32>
    %c0_24 = arith.constant 0 : index
    %c0_25 = arith.constant 0 : index
    %32 = vector.load %arg11[%c0_24, %c0_25] : memref<8x128xf32, #tpu.memory_space<vmem>>, vector<8x128xf32>
    tpu.vector_store %arg11[%c0_24, %c0_25], %31 {strides = array<i32>} : memref<8x128xf32, #tpu.memory_space<vmem>>, vector<8x128xf32>,
    return
  }
  func.func @transform_0(%arg0: i32) -> (i32, i32) {
    %c0_i32 = arith.constant 0 : i32
    %c0_i32_0 = arith.constant 0 : i32
    return %arg0, %c0_i32 : i32, i32
  }
  func.func @transform_1(%arg0: i32) -> (i32, i32) {
    %c0_i32 = arith.constant 0 : i32
    %c0_i32_0 = arith.constant 0 : i32
    return %arg0, %c0_i32 : i32, i32
  }
  func.func @transform_2(%arg0: i32) -> (i32, i32) {
    %c0_i32 = arith.constant 0 : i32
    %c0_i32_0 = arith.constant 0 : i32
    %c0_i32_1 = arith.constant 0 : i32
    return %c0_i32, %c0_i32_0 : i32, i32
  }
  func.func @transform_3(%arg0: i32) -> (i32, i32) {
    %c0_i32 = arith.constant 0 : i32
    %c0_i32_0 = arith.constant 0 : i32
    %c0_i32_1 = arith.constant 0 : i32
    return %c0_i32, %c0_i32_0 : i32, i32
  }
  func.func @transform_4(%arg0: i32) -> (i32, i32) {
    %c0_i32 = arith.constant 0 : i32
    %c0_i32_0 = arith.constant 0 : i32
    %c0_i32_1 = arith.constant 0 : i32
    return %c0_i32, %c0_i32_0 : i32, i32
  }
  func.func @transform_5(%arg0: i32) -> (i32, i32) {
    %c0_i32 = arith.constant 0 : i32
    %c0_i32_0 = arith.constant 0 : i32
    %c0_i32_1 = arith.constant 0 : i32
    return %c0_i32, %c0_i32_0 : i32, i32
  }
  func.func @transform_6(%arg0: i32) -> (i32, i32) {
    %c0_i32 = arith.constant 0 : i32
    %c0_i32_0 = arith.constant 0 : i32
    %c0_i32_1 = arith.constant 0 : i32
    return %c0_i32, %c0_i32_0 : i32, i32
  }
  func.func @transform_7(%arg0: i32) -> (i32, i32) {
    %c0_i32 = arith.constant 0 : i32
    %c0_i32_0 = arith.constant 0 : i32
    %c0_i32_1 = arith.constant 0 : i32
    return %c0_i32, %c0_i32_0 : i32, i32
  }
  func.func @transform_8(%arg0: i32) -> (i32, i32) {
    %c0_i32 = arith.constant 0 : i32
    %c0_i32_0 = arith.constant 0 : i32
    %c0_i32_1 = arith.constant 0 : i32
    return %c0_i32, %c0_i32_0 : i32, i32
  }
  func.func @transform_9(%arg0: i32) -> (i32, i32) {
    %c0_i32 = arith.constant 0 : i32
    %c0_i32_0 = arith.constant 0 : i32
    %c0_i32_1 = arith.constant 0 : i32
    return %c0_i32, %c0_i32_0 : i32, i32
  }
  func.func @transform_10(%arg0: i32) -> (i32, i32) {
    %c0_i32 = arith.constant 0 : i32
    %c0_i32_0 = arith.constant 0 : i32
    return %arg0, %c0_i32 : i32, i32
  }
}

</mosaic_0001>

<llo_original>
// kernel: _lambda_.1
$region0: #{_lambda_.1}
  #allocation0 [shape = 'u32[]', space=smem, size = 0x4, offset = 0x4, fixed_abs, tag = 'smem constant byte address 0x4 - core index']
  #allocation1 [shape = 'u32[72,128]{1,0:T(1,128)}', space=vmem, size = 0x9000, scoped, tag = 'internal scratch']
  %s0 = inlined_call_operand.hbm [shape: f32[8,128], index: 0, kind: input, shape index: {}]
  %s1 = inlined_call_operand.hbm [shape: f32[8,128], index: 1, kind: input, shape index: {}]
  %s2 = inlined_call_operand.hbm [shape: bf16[128,128], index: 2, kind: input, shape index: {}]
  %s3 = inlined_call_operand.vmem [shape: f32[1,128], index: 3, kind: input, shape index: {}, may-alias: {3,7}]
  %s4 = inlined_call_operand.hbm [shape: bf16[128,128], index: 4, kind: input, shape index: {}]
  %s5 = inlined_call_operand.vmem [shape: f32[1,128], index: 5, kind: input, shape index: {}]
  %s6 = inlined_call_operand.hbm [shape: bf16[128,128], index: 6, kind: input, shape index: {}]
  %s7 = inlined_call_operand.vmem [shape: f32[1,128], index: 7, kind: input, shape index: {}, may-alias: {3,7}]
  %s8 = inlined_call_operand.hbm [shape: bf16[128,128], index: 8, kind: input, shape index: {}]
  %s9 = inlined_call_operand.vmem [shape: f32[1,128], index: 9, kind: input, shape index: {}]
  %s10 = inlined_call_operand.hbm [shape: f32[8,128], index: 10, kind: output, shape index: {}]
  %s11 = sld [smem:[#allocation0]]
  $region74: #{_lambda_.1} parent=0
    _
  %s13 = ssub.s32 1, %s11
  %s14 = scalar_select 0, %s13, %s11
  $region1: #{_lambda_.1} parent=0
    #allocation2 [shape = 'u8[4096]{0}', space=vmem, size = 0x1000, scoped, tag = 'input window, operand 0, single buffered']
    #allocation3 [shape = 's32[1]{0}', space=sflag, size = 0x4, scoped, tag = 'scoped memory for _lambda_.1']
    #allocation4 [shape = 's32[1]{0}', space=sflag, size = 0x4, scoped, tag = 'scoped memory for _lambda_.1']
    #allocation5 [shape = 'u8[4096]{0}', space=vmem, size = 0x1000, scoped, tag = 'input window, operand 1, single buffered']
    #allocation6 [shape = 's32[1]{0}', space=sflag, size = 0x4, scoped, tag = 'scoped memory for _lambda_.1']
    #allocation7 [shape = 'u8[32768]{0}', space=vmem, size = 0x8000, scoped, tag = 'input window, operand 2, single buffered']
    #allocation8 [shape = 'u8[32768]{0}', space=vmem, size = 0x8000, scoped, tag = 'input window, operand 4, single buffered']
    #allocation9 [shape = 's32[1]{0}', space=sflag, size = 0x4, scoped, tag = 'scoped memory for _lambda_.1']
    #allocation10 [shape = 'u8[32768]{0}', space=vmem, size = 0x8000, scoped, tag = 'input window, operand 6, single buffered']
    #allocation11 [shape = 'u8[32768]{0}', space=vmem, size = 0x8000, scoped, tag = 'input window, operand 8, single buffered']
    #allocation12 [shape = 's32[1]{0}', space=sflag, size = 0x4, scoped, tag = 'scoped memory for _lambda_.1']
    #allocation13 [shape = 'u8[4096]{0}', space=vmem, size = 0x1000, scoped, tag = 'output window, operand 0, single buffered']
    %15 = vsyncpa [#allocation3], 0
    %16 = vsyncpa [#allocation6], 0
    %17 = vsyncpa [#allocation9], 0
    %18 = vsyncpa [#allocation12], 0
    %19 = vsyncpa [#allocation4], 0
    // Predicated region
    $region2: #{_lambda_.1} parent=1 // pred_check
      _
    $region3: #{_lambda_.1} parent=1 // pred_check_branch
      %21 = sbr.rel (0) target = $region5
    $region4: #{_lambda_.1} parent=1 // pred_region
      %23 = vsyncadd [#allocation3], 0
      %s25 = sshll.u32 %s0, 4
      %s26 = int_to_ptr.hbm [resolvable:$true] %s25
      %s27 = sshll.u32 [#allocation2], 4
      %s28 = int_to_ptr.vmem [resolvable:$true] %s27
      %30 = dma.hbm_to_vmem [thread:$0]  %s26, 128, %s28, [#allocation3]
    $region5: #{_lambda_.1} parent=1 // pred_fallthru
      _
    // Predicated region
    $region6: #{_lambda_.1} parent=1 // pred_check
      _
    $region7: #{_lambda_.1} parent=1 // pred_check_branch
      %32 = sbr.rel (0) target = $region9
    $region8: #{_lambda_.1} parent=1 // pred_region
      %34 = vsyncadd [#allocation6], 0
      %s36 = sshll.u32 %s1, 4
      %s37 = int_to_ptr.hbm [resolvable:$true] %s36
      %s38 = sshll.u32 [#allocation5], 4
      %s39 = int_to_ptr.vmem [resolvable:$true] %s38
      %41 = dma.hbm_to_vmem [thread:$0]  %s37, 128, %s39, [#allocation6]
    $region9: #{_lambda_.1} parent=1 // pred_fallthru
      _
    // Predicated region
    $region10: #{_lambda_.1} parent=1 // pred_check
      _
    $region11: #{_lambda_.1} parent=1 // pred_check_branch
      %43 = sbr.rel (0) target = $region13
    $region12: #{_lambda_.1} parent=1 // pred_region
      %45 = vsyncadd [#allocation6], 0
      %s46 = sshll.u32 %s2, 4
      %s47 = int_to_ptr.hbm [resolvable:$true] %s46
      %s48 = sshll.u32 [#allocation7], 4
      %s49 = int_to_ptr.vmem [resolvable:$true] %s48
      %54 = dma.hbm_to_vmem [thread:$0]  %s47, 1024, %s49, [#allocation6], 64, 64, 4
    $region13: #{_lambda_.1} parent=1 // pred_fallthru
      _
    // Predicated region
    $region14: #{_lambda_.1} parent=1 // pred_check
      _
    $region15: #{_lambda_.1} parent=1 // pred_check_branch
      %56 = sbr.rel (0) target = $region17
    $region16: #{_lambda_.1} parent=1 // pred_region
      _
    $region17: #{_lambda_.1} parent=1 // pred_fallthru
      _
    // Predicated region
    $region18: #{_lambda_.1} parent=1 // pred_check
      _
    $region19: #{_lambda_.1} parent=1 // pred_check_branch
      %58 = sbr.rel (0) target = $region21
    $region20: #{_lambda_.1} parent=1 // pred_region
      %60 = vsyncadd [#allocation9], 0
      %s61 = sshll.u32 %s4, 4
      %s62 = int_to_ptr.hbm [resolvable:$true] %s61
      %s63 = sshll.u32 [#allocation8], 4
      %s64 = int_to_ptr.vmem [resolvable:$true] %s63
      %69 = dma.hbm_to_vmem [thread:$0]  %s62, 1024, %s64, [#allocation9], 64, 64, 4
    $region21: #{_lambda_.1} parent=1 // pred_fallthru
      _
    // Predicated region
    $region22: #{_lambda_.1} parent=1 // pred_check
      _
    $region23: #{_lambda_.1} parent=1 // pred_check_branch
      %71 = sbr.rel (0) target = $region25
    $region24: #{_lambda_.1} parent=1 // pred_region
      _
    $region25: #{_lambda_.1} parent=1 // pred_fallthru
      _
    // Predicated region
    $region26: #{_lambda_.1} parent=1 // pred_check
      _
    $region27: #{_lambda_.1} parent=1 // pred_check_branch
      %73 = sbr.rel (0) target = $region29
    $region28: #{_lambda_.1} parent=1 // pred_region
      %75 = vsyncadd [#allocation9], 0
      %s76 = sshll.u32 %s6, 4
      %s77 = int_to_ptr.hbm [resolvable:$true] %s76
      %s78 = sshll.u32 [#allocation10], 4
      %s79 = int_to_ptr.vmem [resolvable:$true] %s78
      %84 = dma.hbm_to_vmem [thread:$0]  %s77, 1024, %s79, [#allocation9], 64, 64, 4
    $region29: #{_lambda_.1} parent=1 // pred_fallthru
      _
    // Predicated region
    $region30: #{_lambda_.1} parent=1 // pred_check
      _
    $region31: #{_lambda_.1} parent=1 // pred_check_branch
      %86 = sbr.rel (0) target = $region33
    $region32: #{_lambda_.1} parent=1 // pred_region
      _
    $region33: #{_lambda_.1} parent=1 // pred_fallthru
      _
    // Predicated region
    $region34: #{_lambda_.1} parent=1 // pred_check
      _
    $region35: #{_lambda_.1} parent=1 // pred_check_branch
      %88 = sbr.rel (0) target = $region37
    $region36: #{_lambda_.1} parent=1 // pred_region
      %90 = vsyncadd [#allocation12], 0
      %s91 = sshll.u32 %s8, 4
      %s92 = int_to_ptr.hbm [resolvable:$true] %s91
      %s93 = sshll.u32 [#allocation11], 4
      %s94 = int_to_ptr.vmem [resolvable:$true] %s93
      %99 = dma.hbm_to_vmem [thread:$0]  %s92, 1024, %s94, [#allocation12], 64, 64, 4
    $region37: #{_lambda_.1} parent=1 // pred_fallthru
      _
    // Predicated region
    $region38: #{_lambda_.1} parent=1 // pred_check
      _
    $region39: #{_lambda_.1} parent=1 // pred_check_branch
      %101 = sbr.rel (0) target = $region41
    $region40: #{_lambda_.1} parent=1 // pred_region
      _
    $region41: #{_lambda_.1} parent=1 // pred_fallthru
      _
    // Predicated region
    $region42: #{_lambda_.1} parent=1 // pred_check
      _
    $region43: #{_lambda_.1} parent=1 // pred_check_branch
      %103 = sbr.rel (0) target = $region45
    $region44: #{_lambda_.1} parent=1 // pred_region
      %105 = dma.done [#allocation3], 128
    $region45: #{_lambda_.1} parent=1 // pred_fallthru
      _
    // Predicated region
    $region46: #{_lambda_.1} parent=1 // pred_check
      _
    $region47: #{_lambda_.1} parent=1 // pred_check_branch
      %107 = sbr.rel (0) target = $region49
    $region48: #{_lambda_.1} parent=1 // pred_region
      %109 = dma.done [#allocation6], 128
    $region49: #{_lambda_.1} parent=1 // pred_fallthru
      _
    // Predicated region
    $region50: #{_lambda_.1} parent=1 // pred_check
      _
    $region51: #{_lambda_.1} parent=1 // pred_check_branch
      %111 = sbr.rel (0) target = $region53
    $region52: #{_lambda_.1} parent=1 // pred_region
      %113 = dma.done [#allocation6], 1024
    $region53: #{_lambda_.1} parent=1 // pred_fallthru
      _
    // Predicated region
    $region54: #{_lambda_.1} parent=1 // pred_check
      _
    $region55: #{_lambda_.1} parent=1 // pred_check_branch
      %115 = sbr.rel (0) target = $region57
    $region56: #{_lambda_.1} parent=1 // pred_region
      %117 = dma.done [#allocation9], 1024
    $region57: #{_lambda_.1} parent=1 // pred_fallthru
      _
    // Predicated region
    $region58: #{_lambda_.1} parent=1 // pred_check
      _
    $region59: #{_lambda_.1} parent=1 // pred_check_branch
      %119 = sbr.rel (0) target = $region61
    $region60: #{_lambda_.1} parent=1 // pred_region
      %121 = dma.done [#allocation9], 1024
    $region61: #{_lambda_.1} parent=1 // pred_fallthru
      _
    // Predicated region
    $region62: #{_lambda_.1} parent=1 // pred_check
      _
    $region63: #{_lambda_.1} parent=1 // pred_check_branch
      %123 = sbr.rel (0) target = $region65
    $region64: #{_lambda_.1} parent=1 // pred_region
      %125 = dma.done [#allocation12], 1024
    $region65: #{_lambda_.1} parent=1 // pred_fallthru
      _
    %v126 = vld [vmem:[#allocation2] sm:$0xff]
    %v127 = vpack.c.bf16 %v126, %v126
    %v128 = vld [vmem:[#allocation7] sm:$0xf]
    %v129 = vld [vmem:[#allocation7 + $0x4] sm:$0xf]
    %v130 = vld [vmem:[#allocation7 + $0x8] sm:$0xf]
    %v131 = vld [vmem:[#allocation7 + $0xc] sm:$0xf]
    %v132 = vld [vmem:[#allocation7 + $0x10] sm:$0xf]
    %v133 = vld [vmem:[#allocation7 + $0x14] sm:$0xf]
    %v134 = vld [vmem:[#allocation7 + $0x18] sm:$0xf]
    %v135 = vld [vmem:[#allocation7 + $0x1c] sm:$0xf]
    %v136 = vld [vmem:[#allocation7 + $0x20] sm:$0xf]
    %v137 = vld [vmem:[#allocation7 + $0x24] sm:$0xf]
    %v138 = vld [vmem:[#allocation7 + $0x28] sm:$0xf]
    %v139 = vld [vmem:[#allocation7 + $0x2c] sm:$0xf]
    %v140 = vld [vmem:[#allocation7 + $0x30] sm:$0xf]
    %v141 = vld [vmem:[#allocation7 + $0x34] sm:$0xf]
    %v142 = vld [vmem:[#allocation7 + $0x38] sm:$0xf]
    %v143 = vld [vmem:[#allocation7 + $0x3c] sm:$0xf]
    %v144 = vld [vmem:[%s3] sm:$0x1]
    %v146 = vperm.slane %v144, 0
    %v164 = vunpack.c.l.b16 %v128
    %v165 = vunpack.c.l.b16 %v129
    %v166 = vunpack.c.l.b16 %v130
    %v167 = vunpack.c.l.b16 %v131
    %v168 = vunpack.c.l.b16 %v132
    %v169 = vunpack.c.l.b16 %v133
    %v170 = vunpack.c.l.b16 %v134
    %v171 = vunpack.c.l.b16 %v135
    %v172 = vunpack.c.l.b16 %v136
    %v173 = vunpack.c.l.b16 %v137
    %v174 = vunpack.c.l.b16 %v138
    %v175 = vunpack.c.l.b16 %v139
    %v176 = vunpack.c.l.b16 %v140
    %v177 = vunpack.c.l.b16 %v141
    %v178 = vunpack.c.l.b16 %v142
    %v179 = vunpack.c.l.b16 %v143
    %v180 = vpack.c.b16 %v165, %v164
    %v181 = vpack.c.b16 %v167, %v166
    %v182 = vpack.c.b16 %v169, %v168
    %v183 = vpack.c.b16 %v171, %v170
    %v184 = vpack.c.b16 %v173, %v172
    %v185 = vpack.c.b16 %v175, %v174
    %v186 = vpack.c.b16 %v177, %v176
    %v187 = vpack.c.b16 %v179, %v178
    %196 = vmatpush.bf16.msra.mxu0 %v187
    %197 = vmatpush.bf16.msra.mxu0 %v186
    %198 = vmatpush.bf16.msra.mxu0 %v185
    %199 = vmatpush.bf16.msra.mxu0 %v184
    %200 = vmatpush.bf16.msra.mxu0 %v183
    %201 = vmatpush.bf16.msra.mxu0 %v182
    %202 = vmatpush.bf16.msra.mxu0 %v181
    %203 = vmatpush.bf16.msra.mxu0 %v180
    %204 = vmatmul.bf16.gmra.mxu0 %v127
    %v205 = vpop.f32.mrf.mxu0
    %v206 = vadd.f32 %v146, %v205
    %v207 = vpop.f32.mrf.mxu0
    %208 = vdwg.mxu0
    %v209 = vmax.f32 %v206, 0.0
    %v210 = vld [vmem:[#allocation5] sm:$0xff]
    %v211 = vadd.f32 %v209, %v210
    %v212 = vpack.c.bf16 %v211, %v211
    %v213 = vld [vmem:[#allocation8] sm:$0xf]
    %v214 = vld [vmem:[#allocation8 + $0x4] sm:$0xf]
    %v215 = vld [vmem:[#allocation8 + $0x8] sm:$0xf]
    %v216 = vld [vmem:[#allocation8 + $0xc] sm:$0xf]
    %v217 = vld [vmem:[#allocation8 + $0x10] sm:$0xf]
    %v218 = vld [vmem:[#allocation8 + $0x14] sm:$0xf]
    %v219 = vld [vmem:[#allocation8 + $0x18] sm:$0xf]
    %v220 = vld [vmem:[#allocation8 + $0x1c] sm:$0xf]
    %v221 = vld [vmem:[#allocation8 + $0x20] sm:$0xf]
    %v222 = vld [vmem:[#allocation8 + $0x24] sm:$0xf]
    %v223 = vld [vmem:[#allocation8 + $0x28] sm:$0xf]
    %v224 = vld [vmem:[#allocation8 + $0x2c] sm:$0xf]
    %v225 = vld [vmem:[#allocation8 + $0x30] sm:$0xf]
    %v226 = vld [vmem:[#allocation8 + $0x34] sm:$0xf]
    %v227 = vld [vmem:[#allocation8 + $0x38] sm:$0xf]
    %v228 = vld [vmem:[#allocation8 + $0x3c] sm:$0xf]
    %v229 = vld [vmem:[%s5] sm:$0x1]
    %v231 = vperm.slane %v229, 0
    %v249 = vunpack.c.l.b16 %v213
    %v250 = vunpack.c.l.b16 %v214
    %v251 = vunpack.c.l.b16 %v215
    %v252 = vunpack.c.l.b16 %v216
    %v253 = vunpack.c.l.b16 %v217
    %v254 = vunpack.c.l.b16 %v218
    %v255 = vunpack.c.l.b16 %v219
    %v256 = vunpack.c.l.b16 %v220
    %v257 = vunpack.c.l.b16 %v221
    %v258 = vunpack.c.l.b16 %v222
    %v259 = vunpack.c.l.b16 %v223
    %v260 = vunpack.c.l.b16 %v224
    %v261 = vunpack.c.l.b16 %v225
    %v262 = vunpack.c.l.b16 %v226
    %v263 = vunpack.c.l.b16 %v227
    %v264 = vunpack.c.l.b16 %v228
    %v265 = vpack.c.b16 %v250, %v249
    %v266 = vpack.c.b16 %v252, %v251
    %v267 = vpack.c.b16 %v254, %v253
    %v268 = vpack.c.b16 %v256, %v255
    %v269 = vpack.c.b16 %v258, %v257
    %v270 = vpack.c.b16 %v260, %v259
    %v271 = vpack.c.b16 %v262, %v261
    %v272 = vpack.c.b16 %v264, %v263
    %281 = vmatpush.bf16.msra.mxu0 %v272
    %282 = vmatpush.bf16.msra.mxu0 %v271
    %283 = vmatpush.bf16.msra.mxu0 %v270
    %284 = vmatpush.bf16.msra.mxu0 %v269
    %285 = vmatpush.bf16.msra.mxu0 %v268
    %286 = vmatpush.bf16.msra.mxu0 %v267
    %287 = vmatpush.bf16.msra.mxu0 %v266
    %288 = vmatpush.bf16.msra.mxu0 %v265
    %289 = vmatmul.bf16.gmra.mxu0 %v212
    %v290 = vpop.f32.mrf.mxu0
    %v291 = vadd.f32 %v231, %v290
    %v292 = vpop.f32.mrf.mxu0
    %293 = vdwg.mxu0
    %v294 = vmax.f32 %v291, 0.0
    %v295 = vpack.c.bf16 %v294, %v294
    %v296 = vld [vmem:[#allocation10] sm:$0xf]
    %v297 = vld [vmem:[#allocation10 + $0x4] sm:$0xf]
    %v298 = vld [vmem:[#allocation10 + $0x8] sm:$0xf]
    %v299 = vld [vmem:[#allocation10 + $0xc] sm:$0xf]
    %v300 = vld [vmem:[#allocation10 + $0x10] sm:$0xf]
    %v301 = vld [vmem:[#allocation10 + $0x14] sm:$0xf]
    %v302 = vld [vmem:[#allocation10 + $0x18] sm:$0xf]
    %v303 = vld [vmem:[#allocation10 + $0x1c] sm:$0xf]
    %v304 = vld [vmem:[#allocation10 + $0x20] sm:$0xf]
    %v305 = vld [vmem:[#allocation10 + $0x24] sm:$0xf]
    %v306 = vld [vmem:[#allocation10 + $0x28] sm:$0xf]
    %v307 = vld [vmem:[#allocation10 + $0x2c] sm:$0xf]
    %v308 = vld [vmem:[#allocation10 + $0x30] sm:$0xf]
    %v309 = vld [vmem:[#allocation10 + $0x34] sm:$0xf]
    %v310 = vld [vmem:[#allocation10 + $0x38] sm:$0xf]
    %v311 = vld [vmem:[#allocation10 + $0x3c] sm:$0xf]
    %v312 = vld [vmem:[%s7] sm:$0x1]
    %v314 = vperm.slane %v312, 0
    %v332 = vunpack.c.l.b16 %v296
    %v333 = vunpack.c.l.b16 %v297
    %v334 = vunpack.c.l.b16 %v298
    %v335 = vunpack.c.l.b16 %v299
    %v336 = vunpack.c.l.b16 %v300
    %v337 = vunpack.c.l.b16 %v301
    %v338 = vunpack.c.l.b16 %v302
    %v339 = vunpack.c.l.b16 %v303
    %v340 = vunpack.c.l.b16 %v304
    %v341 = vunpack.c.l.b16 %v305
    %v342 = vunpack.c.l.b16 %v306
    %v343 = vunpack.c.l.b16 %v307
    %v344 = vunpack.c.l.b16 %v308
    %v345 = vunpack.c.l.b16 %v309
    %v346 = vunpack.c.l.b16 %v310
    %v347 = vunpack.c.l.b16 %v311
    %v348 = vpack.c.b16 %v333, %v332
    %v349 = vpack.c.b16 %v335, %v334
    %v350 = vpack.c.b16 %v337, %v336
    %v351 = vpack.c.b16 %v339, %v338
    %v352 = vpack.c.b16 %v341, %v340
    %v353 = vpack.c.b16 %v343, %v342
    %v354 = vpack.c.b16 %v345, %v344
    %v355 = vpack.c.b16 %v347, %v346
    %364 = vmatpush.bf16.msra.mxu0 %v355
    %365 = vmatpush.bf16.msra.mxu0 %v354
    %366 = vmatpush.bf16.msra.mxu0 %v353
    %367 = vmatpush.bf16.msra.mxu0 %v352
    %368 = vmatpush.bf16.msra.mxu0 %v351
    %369 = vmatpush.bf16.msra.mxu0 %v350
    %370 = vmatpush.bf16.msra.mxu0 %v349
    %371 = vmatpush.bf16.msra.mxu0 %v348
    %372 = vmatmul.bf16.gmra.mxu0 %v295
    %v373 = vpop.f32.mrf.mxu0
    %v374 = vadd.f32 %v314, %v373
    %v375 = vpop.f32.mrf.mxu0
    %376 = vdwg.mxu0
    %v377 = vadd.f32 %v209, %v374
    %v378 = vpack.c.bf16 %v377, %v377
    %v379 = vld [vmem:[#allocation11] sm:$0xf]
    %v380 = vld [vmem:[#allocation11 + $0x4] sm:$0xf]
    %v381 = vld [vmem:[#allocation11 + $0x8] sm:$0xf]
    %v382 = vld [vmem:[#allocation11 + $0xc] sm:$0xf]
    %v383 = vld [vmem:[#allocation11 + $0x10] sm:$0xf]
    %v384 = vld [vmem:[#allocation11 + $0x14] sm:$0xf]
    %v385 = vld [vmem:[#allocation11 + $0x18] sm:$0xf]
    %v386 = vld [vmem:[#allocation11 + $0x1c] sm:$0xf]
    %v387 = vld [vmem:[#allocation11 + $0x20] sm:$0xf]
    %v388 = vld [vmem:[#allocation11 + $0x24] sm:$0xf]
    %v389 = vld [vmem:[#allocation11 + $0x28] sm:$0xf]
    %v390 = vld [vmem:[#allocation11 + $0x2c] sm:$0xf]
    %v391 = vld [vmem:[#allocation11 + $0x30] sm:$0xf]
    %v392 = vld [vmem:[#allocation11 + $0x34] sm:$0xf]
    %v393 = vld [vmem:[#allocation11 + $0x38] sm:$0xf]
    %v394 = vld [vmem:[#allocation11 + $0x3c] sm:$0xf]
    %v395 = vld [vmem:[%s9] sm:$0x1]
    %v397 = vperm.slane %v395, 0
    %v415 = vunpack.c.l.b16 %v379
    %v416 = vunpack.c.l.b16 %v380
    %v417 = vunpack.c.l.b16 %v381
    %v418 = vunpack.c.l.b16 %v382
    %v419 = vunpack.c.l.b16 %v383
    %v420 = vunpack.c.l.b16 %v384
    %v421 = vunpack.c.l.b16 %v385
    %v422 = vunpack.c.l.b16 %v386
    %v423 = vunpack.c.l.b16 %v387
    %v424 = vunpack.c.l.b16 %v388
    %v425 = vunpack.c.l.b16 %v389
    %v426 = vunpack.c.l.b16 %v390
    %v427 = vunpack.c.l.b16 %v391
    %v428 = vunpack.c.l.b16 %v392
    %v429 = vunpack.c.l.b16 %v393
    %v430 = vunpack.c.l.b16 %v394
    %v431 = vpack.c.b16 %v416, %v415
    %v432 = vpack.c.b16 %v418, %v417
    %v433 = vpack.c.b16 %v420, %v419
    %v434 = vpack.c.b16 %v422, %v421
    %v435 = vpack.c.b16 %v424, %v423
    %v436 = vpack.c.b16 %v426, %v425
    %v437 = vpack.c.b16 %v428, %v427
    %v438 = vpack.c.b16 %v430, %v429
    %447 = vmatpush.bf16.msra.mxu0 %v438
    %448 = vmatpush.bf16.msra.mxu0 %v437
    %449 = vmatpush.bf16.msra.mxu0 %v436
    %450 = vmatpush.bf16.msra.mxu0 %v435
    %451 = vmatpush.bf16.msra.mxu0 %v434
    %452 = vmatpush.bf16.msra.mxu0 %v433
    %453 = vmatpush.bf16.msra.mxu0 %v432
    %454 = vmatpush.bf16.msra.mxu0 %v431
    %455 = vmatmul.bf16.gmra.mxu0 %v378
    %v456 = vpop.f32.mrf.mxu0
    %v457 = vadd.f32 %v397, %v456
    %v458 = vpop.f32.mrf.mxu0
    %459 = vdwg.mxu0
    %460 = vst [vmem:[#allocation13] sm:$0xff] %v457
    // Predicated region
    $region66: #{_lambda_.1} parent=1 // pred_check
      _
    $region67: #{_lambda_.1} parent=1 // pred_check_branch
      %462 = sbr.rel (0) target = $region69
    $region68: #{_lambda_.1} parent=1 // pred_region
      %464 = vsyncadd [#allocation4], 0
      %s466 = sshll.u32 [#allocation13], 4
      %s467 = int_to_ptr.vmem [resolvable:$true] %s466
      %s468 = sshll.u32 %s10, 4
      %s469 = int_to_ptr.hbm [resolvable:$true] %s468
      %471 = dma.vmem_to_hbm [thread:$0]  %s467, 128, %s469, [#allocation4]
    $region69: #{_lambda_.1} parent=1 // pred_fallthru
      _
    // Predicated region
    $region70: #{_lambda_.1} parent=1 // pred_check
      _
    $region71: #{_lambda_.1} parent=1 // pred_check_branch
      %473 = sbr.rel (0) target = $region73
    $region72: #{_lambda_.1} parent=1 // pred_region
      %475 = dma.done [#allocation4], 128
    $region73: #{_lambda_.1} parent=1 // pred_fallthru
      _
    %476 = vsyncpa [#allocation3], 1
    %477 = vsyncpa [#allocation6], 1
    %478 = vsyncpa [#allocation9], 1
    %479 = vsyncpa [#allocation12], 1
    %480 = vsyncpa [#allocation4], 1

</llo_original>
